<compile_context>
chip_gen: v5e
topology: v5e:2x2
jax: 0.10.0
libtpu: 0.0.40
codegen_flags: <defaults>
</compile_context>

<pallas_src>
from functools import lru_cache, partial

import jax
import jax.numpy as jnp
from jax.experimental import pallas as pl
from jax.experimental.pallas import tpu as pltpu

EPS = 1e-5


# -----------------------------------------------------------------------------
# pltpu.roll is documented to follow jnp.roll (positive shift moves elements to
# higher indices).  Verify the lane-rotate direction once on-device so the 3x3
# tap offsets can never silently flip on an unexpected backend/version.
def _roll_probe_kernel(x_ref, o_ref):
    o_ref[...] = pltpu.roll(x_ref[...], shift=1, axis=1)


@lru_cache(maxsize=None)
def _roll_sign() -> int:
    x = jnp.broadcast_to(jnp.arange(128, dtype=jnp.float32), (8, 128))
    out = pl.pallas_call(
        _roll_probe_kernel,
        out_shape=jax.ShapeDtypeStruct((8, 128), jnp.float32),
    )(x)
    return 1 if float(out[0, 0]) == 127.0 else -1


# -----------------------------------------------------------------------------
# Fused kernel: one batch image per grid step.
def _dense_layer_kernel(x_ref, s1_ref, t1_ref, w1t_ref, t2_ref, w2_ref,
                        o_ref, h_scr, acc_scr, *,
                        height, width, cin, cout, roll_sign):
    hw = height * width

    # ---- Stage 1: BN1 (folded affine) + ReLU, 1x1 conv (BN2 scale folded into
    #      the weights), BN2 shift + ReLU.  Elementwise in f32, matmul in bf16.
    x = x_ref[0]                                               # (Cin, HW) f32
    a = jnp.maximum(x * s1_ref[...] + t1_ref[...], 0.0)
    h = jnp.dot(w1t_ref[...], a.astype(jnp.bfloat16),
                preferred_element_type=jnp.float32)            # (Cmid, HW), MXU
    h_scr[...] = jnp.maximum(h + t2_ref[...], 0.0)

    # ---- Dense-connection pass-through: input block is already in VMEM, so the
    #      channel concat is written directly (no XLA concatenate pass over HBM).
    o_ref[0, 0:cin, :] = x

    # ---- Stage 2: 3x3 conv (padding=1) as 9 rolled + masked + matmul taps.
    pos = jax.lax.broadcasted_iota(jnp.int32, (1, hw), 1)
    px = pos % width
    py = pos // width

    acc_scr[...] = jnp.zeros_like(acc_scr)
    for k in range(9):
        dy, dx = k // 3 - 1, k % 3 - 1
        if dy == 0 and dx == 0:
            tap = h_scr[...].astype(jnp.bfloat16)
        else:
            delta = dy * width + dx                            # flattened spatial offset
            rolled = pltpu.roll(h_scr[...],
                                shift=(roll_sign * -delta) % hw, axis=1)  # XLU
            valid = ((px + dx >= 0) & (px + dx < width) &
                     (py + dy >= 0) & (py + dy < height))      # zero-padding mask
            tap = jnp.where(valid, rolled, 0.0).astype(jnp.bfloat16)
        acc_scr[...] += jnp.dot(w2_ref[k], tap,
                                preferred_element_type=jnp.float32)       # MXU

    o_ref[0, cin:cin + cout, :] = acc_scr[...].astype(o_ref.dtype)


# -----------------------------------------------------------------------------
# Wrapper: parameter folding + pallas_call.  Input/output are NCHW like PyTorch.
def dense_layer_forward(x_nchw, params):
    (g1, b1, m1, v1, w1, g2, b2, m2, v2, w2) = params
    N, Cin, H, W = x_nchw.shape
    Cmid = w1.shape[1]
    Cout = w2.shape[3]
    HW = H * W

    # Fold the BatchNorms (inference form) into affine vectors / the 1x1 weights.
    scale1 = g1 * jax.lax.rsqrt(v1 + EPS)
    shift1 = b1 - m1 * scale1
    scale2 = g2 * jax.lax.rsqrt(v2 + EPS)
    shift2 = b2 - m2 * scale2

    s1 = scale1[:, None].astype(jnp.float32)                       # (Cin, 1)
    t1 = shift1[:, None].astype(jnp.float32)                       # (Cin, 1)
    w1t = (w1 * scale2[None, :]).T.astype(jnp.bfloat16)            # (Cmid, Cin)
    t2 = shift2[:, None].astype(jnp.float32)                       # (Cmid, 1)
    # Conv3x3 HWIO (3,3,Cmid,Cout) -> 9 taps of shape (Cout, Cmid), tap k = (ky, kx).
    w2_taps = jnp.transpose(w2, (0, 1, 3, 2)).reshape(9, Cout, Cmid).astype(jnp.bfloat16)

    # Channels-first flattening is a free (contiguous) reshape of NCHW.
    x_flat = x_nchw.reshape(N, Cin, HW).astype(jnp.float32)

    kernel = partial(_dense_layer_kernel, height=H, width=W, cin=Cin, cout=Cout,
                     roll_sign=_roll_sign())

    out = pl.pallas_call(
        kernel,
        out_shape=jax.ShapeDtypeStruct((N, Cin + Cout, HW), jnp.float32),
        grid_spec=pltpu.PrefetchScalarGridSpec(
            num_scalar_prefetch=0,
            # One image per grid step: double-buffered DMA across the batch and
            # 2-TC sharding on v7x.  A full DenseNet image block (<= a few MiB)
            # fits comfortably in scoped VMEM.
            # TODO(synk): for single megapixel images add an H-row grid axis with
            # a 1-row recompute halo (Element-indexed blocks or manual DMA).
            grid=(N,),
            in_specs=[
                pl.BlockSpec((1, Cin, HW), lambda n: (n, 0, 0)),   # x (per image)
                pl.BlockSpec((Cin, 1), lambda n: (0, 0)),          # BN1 scale
                pl.BlockSpec((Cin, 1), lambda n: (0, 0)),          # BN1 shift
                pl.BlockSpec((Cmid, Cin), lambda n: (0, 0)),       # folded 1x1 weights
                pl.BlockSpec((Cmid, 1), lambda n: (0, 0)),         # BN2 shift
                pl.BlockSpec((9, Cout, Cmid), lambda n: (0, 0, 0)),  # 3x3 taps
            ],
            out_specs=pl.BlockSpec((1, Cin + Cout, HW), lambda n: (n, 0, 0)),
            scratch_shapes=[
                pltpu.VMEM((Cmid, HW), jnp.float32),   # stage-1 activations
                pltpu.VMEM((Cout, HW), jnp.float32),   # 3x3 accumulator
            ],
        ),
        compiler_params=pltpu.CompilerParams(
            dimension_semantics=("parallel",),
            vmem_limit_bytes=32 * 1024 * 1024,
        ),
    )(x_flat, s1, t1, w1t, t2, w2_taps)

    # Free reshape back to NCHW; the concat is already done inside the kernel.
    return out.reshape(N, Cin + Cout, H, W)


# -----------------------------------------------------------------------------
# Pure-JAX reference (for verification).
def _bn(x, gamma, beta, mean, var):
    return (x - mean) * jax.lax.rsqrt(var + EPS) * gamma + beta


def dense_layer_reference(x_nchw, params):
    (g1, b1, m1, v1, w1, g2, b2, m2, v2, w2) = params
    x = jnp.transpose(x_nchw, (0, 2, 3, 1)).astype(jnp.float32)   # NHWC
    a = jnp.maximum(_bn(x, g1, b1, m1, v1), 0.0)
    h = jax.lax.conv_general_dilated(
        a, w1[None, None, :, :], (1, 1), 'VALID',
        dimension_numbers=('NHWC', 'HWIO', 'NHWC'),
        precision=jax.lax.Precision.HIGHEST)
    h = jnp.maximum(_bn(h, g2, b2, m2, v2), 0.0)
    out = jax.lax.conv_general_dilated(
        h, w2, (1, 1), 'SAME',
        dimension_numbers=('NHWC', 'HWIO', 'NHWC'),
        precision=jax.lax.Precision.HIGHEST)
    out_nchw = jnp.transpose(out, (0, 3, 1, 2))
    return jnp.concatenate([x_nchw, out_nchw], axis=1)


# -----------------------------------------------------------------------------
# Parameter init (PyTorch-equivalent shapes, conv weights pre-arranged for JAX).
def init_params(key, in_channels, growth_rate, bn_size):
    cmid = bn_size * growth_rate
    ks = jax.random.split(key, 10)
    g1 = 1.0 + 0.1 * jax.random.normal(ks[0], (in_channels,), jnp.float32)
    b1 = 0.1 * jax.random.normal(ks[1], (in_channels,), jnp.float32)
    m1 = 0.1 * jax.random.normal(ks[2], (in_channels,), jnp.float32)
    v1 = 0.5 + jnp.abs(jax.random.normal(ks[3], (in_channels,), jnp.float32))
    # Conv1x1 weight, PyTorch (cmid, cin, 1, 1) -> matmul form (cin, cmid)
    w1 = 0.2 * jax.random.normal(ks[4], (in_channels, cmid), jnp.float32)
    g2 = 1.0 + 0.1 * jax.random.normal(ks[5], (cmid,), jnp.float32)
    b2 = 0.1 * jax.random.normal(ks[6], (cmid,), jnp.float32)
    m2 = 0.1 * jax.random.normal(ks[7], (cmid,), jnp.float32)
    v2 = 0.5 + jnp.abs(jax.random.normal(ks[8], (cmid,), jnp.float32))
    # Conv3x3 weight, PyTorch (growth, cmid, 3, 3) -> HWIO (3, 3, cmid, growth)
    w2 = 0.2 * jax.random.normal(ks[9], (3, 3, cmid, growth_rate), jnp.float32)
    return (g1, b1, m1, v1, w1, g2, b2, m2, v2, w2)


if __name__ == "__main__":
    N, Cin, H, W = 2, 4, 16, 16
    growth_rate, bn_size = 4, 2

    key = jax.random.PRNGKey(0)
    kx, kp = jax.random.split(key)
    x = jax.random.normal(kx, (N, Cin, H, W), jnp.float32)
    params = init_params(kp, Cin, growth_rate, bn_size)

    out = jax.block_until_ready(dense_layer_forward(x, params))
    ref = jax.block_until_ready(dense_layer_reference(x, params))

    assert out.shape == (N, Cin + growth_rate, H, W), out.shape
    max_err = float(jnp.max(jnp.abs(out - ref)))
    # bf16 matmul operands (f32 accumulate) vs. a pure-f32 reference.
    assert jnp.allclose(out, ref, atol=2e-2, rtol=2e-2), max_err

    print("KERNEL_OK")
</pallas_src>

<mosaic_0001>
module attributes {stable_mosaic.version = 11 : i64} {
  func.func @_roll_probe_kernel(%arg0: memref<8x128xf32, #tpu.memory_space<vmem>>, %arg1: memref<8x128xf32, #tpu.memory_space<vmem>>) attributes {dimension_semantics = [], scalar_prefetch = 0 : i64, scratch_operands = 0 : i64, tpu.core_type = #tpu.core_type<tc>} {
    %c0 = arith.constant 0 : index
    %c0_0 = arith.constant 0 : index
    %0 = vector.load %arg0[%c0, %c0_0] : memref<8x128xf32, #tpu.memory_space<vmem>>, vector<8x128xf32>
    %c1_i32 = arith.constant 1 : i32
    %1 = tpu.dynamic_rotate %0 by %c1_i32 dim 1 : vector<8x128xf32>, i32 -> vector<8x128xf32>
    %c0_1 = arith.constant 0 : index
    %c0_2 = arith.constant 0 : index
    %2 = vector.load %arg1[%c0_1, %c0_2] : memref<8x128xf32, #tpu.memory_space<vmem>>, vector<8x128xf32>
    tpu.vector_store %arg1[%c0_1, %c0_2], %1 {strides = array<i32>} : memref<8x128xf32, #tpu.memory_space<vmem>>, vector<8x128xf32>,
    return
  }
}

</mosaic_0001>

<llo_original>
// kernel: tpu_custom_call.1
$region0: #{tpu_custom_call.1}
  #allocation0 [shape = 'u32[]', space=smem, size = 0x4, offset = 0x4, fixed_abs, tag = 'smem constant byte address 0x4 - core index']
  #allocation1 [shape = 'u32[72,128]{1,0:T(1,128)}', space=vmem, size = 0x9000, scoped, tag = 'internal scratch']
  %s0 = inlined_call_operand.hbm [shape: f32[8,128], index: 0, kind: input, shape index: {}]
  %s1 = inlined_call_operand.hbm [shape: f32[8,128], index: 1, kind: output, shape index: {}]
  %s2 = sld [smem:[#allocation0]]
  $region18: #{tpu_custom_call.1} parent=0
    _
  %s4 = ssub.s32 1, %s2
  %s5 = scalar_select 0, %s4, %s2
  $region1: #{tpu_custom_call.1} parent=0
    #allocation2 [shape = 'u8[4096]{0}', space=vmem, size = 0x1000, scoped, tag = 'input window, operand 0, single buffered']
    #allocation3 [shape = 's32[1]{0}', space=sflag, size = 0x4, scoped, tag = 'scoped memory for tpu_custom_call.1']
    #allocation4 [shape = 's32[1]{0}', space=sflag, size = 0x4, scoped, tag = 'scoped memory for tpu_custom_call.1']
    #allocation5 [shape = 'u8[4096]{0}', space=vmem, size = 0x1000, scoped, tag = 'output window, operand 0, single buffered']
    %6 = vsyncpa [#allocation3], 0
    %7 = vsyncpa [#allocation4], 0
    // Predicated region
    $region2: #{tpu_custom_call.1} parent=1 // pred_check
      _
    $region3: #{tpu_custom_call.1} parent=1 // pred_check_branch
      %9 = sbr.rel (0) target = $region5
    $region4: #{tpu_custom_call.1} parent=1 // pred_region
      %11 = vsyncadd [#allocation3], 0
      %s13 = sshll.u32 %s0, 4
      %s14 = int_to_ptr.hbm [resolvable:$true] %s13
      %s15 = sshll.u32 [#allocation2], 4
      %s16 = int_to_ptr.vmem [resolvable:$true] %s15
      %18 = dma.hbm_to_vmem [thread:$0]  %s14, 128, %s16, [#allocation3]
    $region5: #{tpu_custom_call.1} parent=1 // pred_fallthru
      _
    // Predicated region
    $region6: #{tpu_custom_call.1} parent=1 // pred_check
      _
    $region7: #{tpu_custom_call.1} parent=1 // pred_check_branch
      %20 = sbr.rel (0) target = $region9
    $region8: #{tpu_custom_call.1} parent=1 // pred_region
      %22 = dma.done [#allocation3], 128
    $region9: #{tpu_custom_call.1} parent=1 // pred_fallthru
      _
    %v23 = vld [vmem:[#allocation2] sm:$0xff]
    %24 = vrot.lane.b32.xlu0 %v23, 1
    %v25 = vpop.permute.xlu0 %24
    %26 = vst [vmem:[#allocation5] sm:$0xff] %v25
    // Predicated region
    $region10: #{tpu_custom_call.1} parent=1 // pred_check
      _
    $region11: #{tpu_custom_call.1} parent=1 // pred_check_branch
      %28 = sbr.rel (0) target = $region13
    $region12: #{tpu_custom_call.1} parent=1 // pred_region
      %30 = vsyncadd [#allocation4], 0
      %s32 = sshll.u32 [#allocation5], 4
      %s33 = int_to_ptr.vmem [resolvable:$true] %s32
      %s34 = sshll.u32 %s1, 4
      %s35 = int_to_ptr.hbm [resolvable:$true] %s34
      %37 = dma.vmem_to_hbm [thread:$0]  %s33, 128, %s35, [#allocation4]
    $region13: #{tpu_custom_call.1} parent=1 // pred_fallthru
      _
    // Predicated region
    $region14: #{tpu_custom_call.1} parent=1 // pred_check
      _
    $region15: #{tpu_custom_call.1} parent=1 // pred_check_branch
      %39 = sbr.rel (0) target = $region17
    $region16: #{tpu_custom_call.1} parent=1 // pred_region
      %41 = dma.done [#allocation4], 128
    $region17: #{tpu_custom_call.1} parent=1 // pred_fallthru
      _
    %42 = vsyncpa [#allocation3], 1
    %43 = vsyncpa [#allocation4], 1

</llo_original>
